<compile_context>
chip_gen: v7x
topology: tpu7x:2x2x1
jax: 0.10.0
libtpu: 0.0.40
codegen_flags: <defaults>
</compile_context>

<pallas_src>
import math
import functools

import numpy as np
import jax
import jax.numpy as jnp
from jax.experimental import pallas as pl
from jax.experimental.pallas import tpu as pltpu


def _rel_pos_bias_kernel(table_t_ref, onehot_ref, out_ref):
    # table_t_ref : (heads, num_buckets) f32 in VMEM (pre-transposed by wrapper)
    # onehot_ref  : (num_buckets, P)     f32 constant gather matrix in VMEM
    # out_ref     : (heads, P)           f32 lane-dense output (P % 128 == 0)
    out_ref[...] = jnp.dot(
        table_t_ref[...], onehot_ref[...], preferred_element_type=jnp.float32
    )


@functools.lru_cache(maxsize=None)
def _bucket_onehot_np(seq_len, num_buckets, max_distance):
    """Host-side (trace-time) bucket math + one-hot gather matrix.

    Returns a (num_buckets, P) float32 one-hot matrix where column d corresponds
    to relative position (j - i) = d - (seq_len - 1), and P is 2*seq_len-1 rounded
    up to a multiple of 128 (padding columns are all-zero).
    """
    half = num_buckets // 2
    max_exact = half // 2
    assert max_exact >= 1, "num_buckets must be >= 4"
    assert max_distance != max_exact, "max_distance must differ from num_buckets // 4"

    # Distinct relative positions d = (j - i) in [-(n-1), n-1].
    rel = np.arange(-(seq_len - 1), seq_len, dtype=np.int64)  # j - i
    n = -rel                                                   # as in the PyTorch bucket fn
    ret = (n < 0).astype(np.int64) * half
    n = np.abs(n)
    is_small = n < max_exact
    # Same float32 / divide-then-multiply order as PyTorch; the clamp keeps log
    # well-defined on the (discarded) small-distance branch.
    val_if_large = max_exact + (
        np.log(np.maximum(n, 1).astype(np.float32) / max_exact)
        / math.log(max_distance / max_exact)
        * (half - max_exact)
    ).astype(np.int64)
    val_if_large = np.minimum(val_if_large, half - 1)
    buckets = ret + np.where(is_small, n, val_if_large)        # (2n-1,) in [0, num_buckets)

    npos = 2 * seq_len - 1
    padded = max(128, ((npos + 127) // 128) * 128)             # lane-dense output width
    onehot = np.zeros((num_buckets, padded), dtype=np.float32)
    onehot[buckets, np.arange(npos)] = 1.0
    return onehot


@functools.partial(jax.jit, static_argnames=("seq_len", "num_buckets", "max_distance"))
def relative_position_bias(table, seq_len, *, num_buckets=32, max_distance=128):
    """table: (num_buckets, heads) f32 (nn.Embedding weight layout).

    Returns (heads, seq_len, seq_len) f32, matching the PyTorch forward.
    """
    heads = table.shape[1]
    onehot = jnp.asarray(_bucket_onehot_np(seq_len, num_buckets, max_distance))
    padded = onehot.shape[1]
    # One-time XLA-side transpose so the kernel never pays an XLU relayout.
    table_t = table.T.astype(jnp.float32)  # (heads, num_buckets)

    # Single grid point; everything (a few KB) resident in VMEM.  Thanks to the
    # Toeplitz reduction the footprint is O(num_buckets * seq_len), so this never
    # needs tiling even on v7x's 64 MiB VMEM.
    vec = pl.pallas_call(
        _rel_pos_bias_kernel,
        out_shape=jax.ShapeDtypeStruct((heads, padded), jnp.float32),
        in_specs=[
            pl.BlockSpec(memory_space=pltpu.MemorySpace.VMEM),
            pl.BlockSpec(memory_space=pltpu.MemorySpace.VMEM),
        ],
        out_specs=pl.BlockSpec(memory_space=pltpu.MemorySpace.VMEM),
    )(table_t, onehot)

    # Toeplitz expansion (heads, 2n-1) -> (heads, n, n): tiny XLA gather (plumbing).
    i = jnp.arange(seq_len)[:, None]
    j = jnp.arange(seq_len)[None, :]
    idx = (j - i) + (seq_len - 1)            # (n, n) in [0, 2n-2]
    return vec[:, idx]


def _reference_np(table, seq_len, num_buckets=32, max_distance=128):
    # Independent pure-NumPy transcription of the PyTorch forward, for verification.
    q = np.arange(seq_len, dtype=np.int64)
    k = np.arange(seq_len, dtype=np.int64)
    rel = k[None, :] - q[:, None]
    n = -rel
    half = num_buckets // 2
    ret = (n < 0).astype(np.int64) * half
    n = np.abs(n)
    max_exact = half // 2
    is_small = n < max_exact
    val_if_large = max_exact + (
        np.log(np.maximum(n, 1).astype(np.float32) / max_exact)
        / math.log(max_distance / max_exact)
        * (half - max_exact)
    ).astype(np.int64)
    val_if_large = np.minimum(val_if_large, half - 1)
    bucket = ret + np.where(is_small, n, val_if_large)
    vals = table[bucket]                      # (n, n, heads)
    return np.transpose(vals, (2, 0, 1))      # (heads, n, n)


if __name__ == "__main__":
    heads, num_buckets, max_distance = 8, 32, 128
    seq_len = 16  # e.g. number of video frames

    # Deterministic "nn.Embedding(num_buckets, heads)" weights ~ N(0, 1).
    key = jax.random.PRNGKey(0)
    table = jax.random.normal(key, (num_buckets, heads), dtype=jnp.float32)

    out = relative_position_bias(
        table, seq_len, num_buckets=num_buckets, max_distance=max_distance
    )
    out = jax.block_until_ready(out)

    ref = _reference_np(np.asarray(table), seq_len, num_buckets, max_distance)
    assert out.shape == (heads, seq_len, seq_len)
    assert np.allclose(np.asarray(out), ref, atol=1e-5), "Pallas kernel mismatch vs reference"

    print("KERNEL_OK")
</pallas_src>

<mosaic_0001>
module attributes {stable_mosaic.version = 11 : i64} {
  func.func @_rel_pos_bias_kernel(%arg0: memref<8x32xf32, #tpu.memory_space<vmem>>, %arg1: memref<32x128xf32, #tpu.memory_space<vmem>>, %arg2: memref<8x128xf32, #tpu.memory_space<vmem>>) attributes {dimension_semantics = [], scalar_prefetch = 0 : i64, scratch_operands = 0 : i64, tpu.core_type = #tpu.core_type<tc>} {
    %c0 = arith.constant 0 : index
    %c0_0 = arith.constant 0 : index
    %0 = vector.load %arg0[%c0, %c0_0] : memref<8x32xf32, #tpu.memory_space<vmem>>, vector<8x32xf32>
    %c0_1 = arith.constant 0 : index
    %c0_2 = arith.constant 0 : index
    %1 = vector.load %arg1[%c0_1, %c0_2] : memref<32x128xf32, #tpu.memory_space<vmem>>, vector<32x128xf32>
    %cst = arith.constant dense<0.000000e+00> : vector<8x128xf32>
    %2 = tpu.matmul %0, %1, %cst {dimension_numbers = #tpu.dot_dimension_numbers<[1], [0], [0], [1], [0, 0, 1, 1], [], []>} : vector<8x32xf32>, vector<32x128xf32>, vector<8x128xf32> -> vector<8x128xf32>
    %c0_3 = arith.constant 0 : index
    %c0_4 = arith.constant 0 : index
    %3 = vector.load %arg2[%c0_3, %c0_4] : memref<8x128xf32, #tpu.memory_space<vmem>>, vector<8x128xf32>
    tpu.vector_store %arg2[%c0_3, %c0_4], %2 {strides = array<i32>} : memref<8x128xf32, #tpu.memory_space<vmem>>, vector<8x128xf32>,
    return
  }
}

</mosaic_0001>

<llo_original>
// kernel: relative_position_bias.1
$region0: #{relative_position_bias.1}
  #allocation0 [shape = 'u32[]', space=smem, size = 0x4, offset = 0x4, fixed_abs, tag = 'smem constant byte address 0x4 - core index']
  #allocation1 [shape = 'u32[144,128]{1,0:T(1,128)}', space=vmem, size = 0x12000, scoped, tag = 'internal scratch']
  %s0 = inlined_call_operand.hbm [shape: f32[8,32], index: 0, kind: input, shape index: {}]
  %s1 = inlined_call_operand.hbm [shape: f32[32,128], index: 1, kind: input, shape index: {}]
  %s2 = inlined_call_operand.vmem [shape: f32[8,128], index: 2, kind: output, shape index: {}]
  %s3 = sld [smem:[#allocation0]]
  $region26: #{relative_position_bias.1} parent=0
    _
  %s5 = ssub.s32 1, %s3
  %s6 = scalar_select 0, %s5, %s3
  $region1: #{relative_position_bias.1} parent=0
    #allocation2 [shape = 'u8[4096]{0}', space=vmem, size = 0x1000, scoped, tag = 'input window, operand 0, single buffered']
    #allocation3 [shape = 's32[1]{0}', space=sflag, size = 0x4, scoped, tag = 'scoped memory for relative_position_bias.1']
    #allocation4 [shape = 'u8[16384]{0}', space=vmem, size = 0x4000, scoped, tag = 'input window, operand 1, single buffered']
    #allocation5 [shape = 's32[1]{0}', space=sflag, size = 0x4, scoped, tag = 'scoped memory for relative_position_bias.1']
    %7 = vsyncpa [#allocation3], 0
    %8 = vsyncpa [#allocation5], 0
    // Predicated region
    $region2: #{relative_position_bias.1} parent=1 // pred_check
      _
    $region3: #{relative_position_bias.1} parent=1 // pred_check_branch
      %10 = sbr.rel (0) target = $region5
    $region4: #{relative_position_bias.1} parent=1 // pred_region
      %s12 = ssub.s32 128, 128
      %13 = vsyncadd [#allocation3], %s12
      %s15 = sshll.u32 [#allocation2], 4
      %s16 = int_to_ptr.vmem [resolvable:$true] %s15
      %18 = dma.hbm_to_vmem [thread:$0]  %s0, 128, %s16, [#allocation3]
    $region5: #{relative_position_bias.1} parent=1 // pred_fallthru
      _
    // Predicated region
    $region6: #{relative_position_bias.1} parent=1 // pred_check
      _
    $region7: #{relative_position_bias.1} parent=1 // pred_check_branch
      %20 = sbr.rel (0) target = $region9
    $region8: #{relative_position_bias.1} parent=1 // pred_region
      %s22 = ssub.s32 512, 512
      %23 = vsyncadd [#allocation5], %s22
      %s24 = sshll.u32 [#allocation4], 4
      %s25 = int_to_ptr.vmem [resolvable:$true] %s24
      %30 = dma.hbm_to_vmem [thread:$0]  %s1, 512, %s25, [#allocation5], 128, 128, 8
    $region9: #{relative_position_bias.1} parent=1 // pred_fallthru
      _
    // Predicated region
    $region10: #{relative_position_bias.1} parent=1 // pred_check
      _
    $region11: #{relative_position_bias.1} parent=1 // pred_check_branch
      %32 = sbr.rel (0) target = $region13
    $region12: #{relative_position_bias.1} parent=1 // pred_region
      %33 = dma.done [#allocation3], 128
    $region13: #{relative_position_bias.1} parent=1 // pred_fallthru
      _
    // Predicated region
    $region14: #{relative_position_bias.1} parent=1 // pred_check
      _
    $region15: #{relative_position_bias.1} parent=1 // pred_check_branch
      %35 = sbr.rel (0) target = $region17
    $region16: #{relative_position_bias.1} parent=1 // pred_region
      %36 = dma.done [#allocation5], 512
    $region17: #{relative_position_bias.1} parent=1 // pred_fallthru
      _
    %v37 = vld [vmem:[#allocation2] sm:$0xff]
    %v38 = vld [vmem:[#allocation4] sm:$0xff]
    %v39 = vld [vmem:[#allocation4 + $0x8] sm:$0xff]
    %v40 = vld [vmem:[#allocation4 + $0x10] sm:$0xff]
    %v41 = vld [vmem:[#allocation4 + $0x18] sm:$0xff]
    %vm42 = vcmask 261120
    %v44 = vsel %vm42, %v37, 0
    %46 = vmatprep.subr.mxu0 0.0
    %47 = vmatpush1.msra.mxu0 %v38
    %48 = vmatprep.subr.mxu0 0.0
    %49 = vmatpush1.msra.mxu0 %v39
    %50 = vmatprep.subr.mxu0 0.0
    %51 = vmatpush1.msra.mxu0 %v40
    %52 = vmatprep.subr.mxu0 0.0
    %53 = vmatpush1.msra.mxu0 %v41
    %54 = vmatprep.subr.mxu0 0.0
    %55 = vmatpush1.msra.mxu0 0.0
    %56 = vmatprep.subr.mxu0 0.0
    %57 = vmatpush1.msra.mxu0 0.0
    %58 = vmatprep.subr.mxu0 0.0
    %59 = vmatpush1.msra.mxu0 0.0
    %60 = vmatprep.subr.mxu0 0.0
    %61 = vmatpush1.msra.mxu0 0.0
    %62 = vmatprep.subr.mxu0 0.0
    %63 = vmatpush1.msra.mxu0 0.0
    %64 = vmatprep.subr.mxu0 0.0
    %65 = vmatpush1.msra.mxu0 0.0
    %66 = vmatprep.subr.mxu0 0.0
    %67 = vmatpush1.msra.mxu0 0.0
    %68 = vmatprep.subr.mxu0 0.0
    %69 = vmatpush1.msra.mxu0 0.0
    %70 = vmatprep.subr.mxu0 0.0
    %71 = vmatpush1.msra.mxu0 0.0
    %72 = vmatprep.subr.mxu0 0.0
    %73 = vmatpush1.msra.mxu0 0.0
    %74 = vmatprep.subr.mxu0 0.0
    %75 = vmatpush1.msra.mxu0 0.0
    %76 = vmatprep.subr.mxu0 0.0
    %77 = vmatpush1.msra.mxu0 0.0
    %78 = vmatprep.subr.mxu0 0.0
    %79 = vmatpush1.msra.mxu0 0.0
    %80 = vmatprep.subr.mxu0 0.0
    %81 = vmatpush1.msra.mxu0 0.0
    %82 = vmatprep.subr.mxu0 0.0
    %83 = vmatpush1.msra.mxu0 0.0
    %84 = vmatprep.subr.mxu0 0.0
    %85 = vmatpush1.msra.mxu0 0.0
    %86 = vmatprep.subr.mxu0 0.0
    %87 = vmatpush1.msra.mxu0 0.0
    %88 = vmatprep.subr.mxu0 0.0
    %89 = vmatpush1.msra.mxu0 0.0
    %90 = vmatprep.subr.mxu0 0.0
    %91 = vmatpush1.msra.mxu0 0.0
    %92 = vmatprep.subr.mxu0 0.0
    %93 = vmatpush1.msra.mxu0 0.0
    %94 = vmatprep.subr.mxu0 0.0
    %95 = vmatpush1.msra.mxu0 0.0
    %96 = vmatprep.subr.mxu0 0.0
    %97 = vmatpush1.msra.mxu0 0.0
    %98 = vmatprep.subr.mxu0 0.0
    %99 = vmatpush1.msra.mxu0 0.0
    %100 = vmatprep.subr.mxu0 0.0
    %101 = vmatpush1.msra.mxu0 0.0
    %102 = vmatprep.subr.mxu0 0.0
    %103 = vmatpush1.msra.mxu0 0.0
    %104 = vmatprep.subr.mxu0 0.0
    %105 = vmatpush1.msra.mxu0 0.0
    %106 = vmatprep.subr.mxu0 0.0
    %107 = vmatpush1.msra.mxu0 0.0
    %108 = vmatprep.subr.mxu0 0.0
    %109 = vmatpush1.msra.mxu0 0.0
    %110 = vmatprep.mubr.f32.mxu0 0.0
    %111 = vmatmul.mubr.f32.gmra.mrb[0].mxu0 %v44
    %v112 = vpop.f32.mrb[0].mxu0
    %v113 = vadd.f32 0.0, %v112
    %v114 = vpop.f32.mrb[0].mxu0
    %115 = vdwg.mxu0
    %116 = vst [vmem:[%s2] sm:$0xff] %v113
    // Predicated region
    $region18: #{relative_position_bias.1} parent=1 // pred_check
      _
    $region19: #{relative_position_bias.1} parent=1 // pred_check_branch
      %118 = sbr.rel (0) target = $region21
    $region20: #{relative_position_bias.1} parent=1 // pred_region
      _
    $region21: #{relative_position_bias.1} parent=1 // pred_fallthru
      _
    // Predicated region
    $region22: #{relative_position_bias.1} parent=1 // pred_check
      _
    $region23: #{relative_position_bias.1} parent=1 // pred_check_branch
      %120 = sbr.rel (0) target = $region25
    $region24: #{relative_position_bias.1} parent=1 // pred_region
      _
    $region25: #{relative_position_bias.1} parent=1 // pred_fallthru
      _
    %121 = vsyncpa [#allocation3], 1
    %122 = vsyncpa [#allocation5], 1

</llo_original>
